<compile_context>
chip_gen: v6e
topology: v6e:2x2x1
jax: 0.10.0
libtpu: 0.0.40
codegen_flags: <defaults>
</compile_context>

<pallas_src>
import jax
import jax.numpy as jnp
from jax.experimental import pallas as pl
from jax.experimental.pallas import tpu as pltpu


def _nonlinear_kernel(x_ref, wy_ref, wg_ref, by_ref, bg_ref, o_ref):
    # x_ref:  [TM, Din]
    # wy_ref: [Din, H]   wg_ref: [Din, H]
    # by_ref: [1, H]     bg_ref: [1, H]
    # o_ref:  [TM, H]
    x = x_ref[...]

    # y = tanh(x @ Wy^T + by)
    y = jnp.dot(x, wy_ref[...], preferred_element_type=jnp.float32) + by_ref[...]
    # g = sigmoid(x @ Wg^T + bg)
    g = jnp.dot(x, wg_ref[...], preferred_element_type=jnp.float32) + bg_ref[...]

    o_ref[...] = (jnp.tanh(y) * jax.nn.sigmoid(g)).astype(o_ref.dtype)


def nonlinear_layer(x, params):
    """x: [..., Din] -> [..., H] with y*g gated-tanh nonlinearity."""
    orig_lead = x.shape[:-1]
    Din = x.shape[-1]

    wy = params["wy"]          # [H, Din]  (PyTorch nn.Linear weight layout)
    wg = params["wg"]          # [H, Din]
    by = params["by"]          # [H]
    bg = params["bg"]          # [H]
    H = wy.shape[0]

    # --- wrapper-side layout plumbing (free; keeps the kernel reshape-free) ---
    x2 = x.reshape(-1, Din).astype(jnp.float32)          # [N, Din]
    N = x2.shape[0]
    wy_t = jnp.asarray(wy.T, jnp.float32)                 # [Din, H]
    wg_t = jnp.asarray(wg.T, jnp.float32)                 # [Din, H]
    by2 = by.reshape(1, H).astype(jnp.float32)            # [1, H]
    bg2 = bg.reshape(1, H).astype(jnp.float32)            # [1, H]

    # Row tile: a single grid step for small problems (N <= 512), otherwise
    # 256-row tiles (still MXU-friendly) with a "parallel" grid axis.
    if N <= 512:
        TM = max(8, ((N + 7) // 8) * 8)
    else:
        TM = 256
    N_pad = ((N + TM - 1) // TM) * TM
    if N_pad != N:
        x2 = jnp.pad(x2, ((0, N_pad - N), (0, 0)))
    grid = (N_pad // TM,)

    out = pl.pallas_call(
        _nonlinear_kernel,
        out_shape=jax.ShapeDtypeStruct((N_pad, H), jnp.float32),
        grid=grid,
        in_specs=[
            pl.BlockSpec((TM, Din), lambda i: (i, 0)),
            pl.BlockSpec((Din, H), lambda i: (0, 0)),
            pl.BlockSpec((Din, H), lambda i: (0, 0)),
            pl.BlockSpec((1, H), lambda i: (0, 0)),
            pl.BlockSpec((1, H), lambda i: (0, 0)),
        ],
        out_specs=pl.BlockSpec((TM, H), lambda i: (i, 0)),
        compiler_params=pltpu.CompilerParams(
            dimension_semantics=("parallel",)),
    )(x2, wy_t, wg_t, by2, bg2)

    return out[:N].reshape(orig_lead + (H,))


def _reference(x, params):
    """Pure-JAX replica of the PyTorch forward, for verification."""
    y = jnp.tanh(x @ params["wy"].T + params["by"])
    g = jax.nn.sigmoid(x @ params["wg"].T + params["bg"])
    return y * g


if __name__ == "__main__":
    B, S, Din, H = 2, 8, 16, 32   # batch, seq, input_dim, out_dim

    key = jax.random.PRNGKey(0)
    kx, k1, k2, k3, k4 = jax.random.split(key, 5)

    x = jax.random.normal(kx, (B, S, Din), jnp.float32)
    params = {
        "wy": 0.2 * jax.random.normal(k1, (H, Din), jnp.float32),
        "by": 0.1 * jax.random.normal(k2, (H,), jnp.float32),
        "wg": 0.2 * jax.random.normal(k3, (H, Din), jnp.float32),
        "bg": 0.1 * jax.random.normal(k4, (H,), jnp.float32),
    }

    out = jax.block_until_ready(nonlinear_layer(x, params))
    out_ref = _reference(x, params)

    assert out.shape == (B, S, H)
    assert jnp.allclose(out, out_ref, atol=1e-5, rtol=1e-5), "mismatch vs reference"
    print("KERNEL_OK")
</pallas_src>

<mosaic_0001>
module attributes {stable_mosaic.version = 11 : i64} {
  func.func @_nonlinear_kernel(%arg0: i32, %arg1: memref<16x16xf32, #tpu.memory_space<vmem>>, %arg2: memref<16x32xf32, #tpu.memory_space<vmem>>, %arg3: memref<16x32xf32, #tpu.memory_space<vmem>>, %arg4: memref<1x32xf32, #tpu.memory_space<vmem>>, %arg5: memref<1x32xf32, #tpu.memory_space<vmem>>, %arg6: memref<16x32xf32, #tpu.memory_space<vmem>>) attributes {dimension_semantics = [#tpu.dimension_semantics<parallel>], iteration_bounds = array<i64: 1>, scalar_prefetch = 0 : i64, scratch_operands = 0 : i64, tpu.core_type = #tpu.core_type<tc>, window_params = [{transform_indices = @transform_0, window_bounds = array<i64: 16, 16>}, {pipeline_mode = #tpu.pipeline_mode<synchronous>, transform_indices = @transform_1, window_bounds = array<i64: 16, 32>}, {pipeline_mode = #tpu.pipeline_mode<synchronous>, transform_indices = @transform_2, window_bounds = array<i64: 16, 32>}, {pipeline_mode = #tpu.pipeline_mode<synchronous>, transform_indices = @transform_3, window_bounds = array<i64: 1, 32>}, {pipeline_mode = #tpu.pipeline_mode<synchronous>, transform_indices = @transform_4, window_bounds = array<i64: 1, 32>}, {transform_indices = @transform_5, window_bounds = array<i64: 16, 32>}]} {
    %c0 = arith.constant 0 : index
    %c0_0 = arith.constant 0 : index
    %0 = vector.load %arg1[%c0, %c0_0] : memref<16x16xf32, #tpu.memory_space<vmem>>, vector<16x16xf32>
    %c0_1 = arith.constant 0 : index
    %c0_2 = arith.constant 0 : index
    %1 = vector.load %arg2[%c0_1, %c0_2] : memref<16x32xf32, #tpu.memory_space<vmem>>, vector<16x32xf32>
    %cst = arith.constant dense<0.000000e+00> : vector<16x32xf32>
    %2 = tpu.matmul %0, %1, %cst {dimension_numbers = #tpu.dot_dimension_numbers<[1], [0], [0], [1], [0, 0, 1, 1], [], []>} : vector<16x16xf32>, vector<16x32xf32>, vector<16x32xf32> -> vector<16x32xf32>
    %c0_3 = arith.constant 0 : index
    %c0_4 = arith.constant 0 : index
    %3 = vector.load %arg4[%c0_3, %c0_4] : memref<1x32xf32, #tpu.memory_space<vmem>>, vector<1x32xf32>
    %4 = vector.broadcast %3 : vector<1x32xf32> to vector<16x32xf32>
    %5 = arith.addf %2, %4 : vector<16x32xf32>
    %c0_5 = arith.constant 0 : index
    %c0_6 = arith.constant 0 : index
    %6 = vector.load %arg3[%c0_5, %c0_6] : memref<16x32xf32, #tpu.memory_space<vmem>>, vector<16x32xf32>
    %cst_7 = arith.constant dense<0.000000e+00> : vector<16x32xf32>
    %7 = tpu.matmul %0, %6, %cst_7 {dimension_numbers = #tpu.dot_dimension_numbers<[1], [0], [0], [1], [0, 0, 1, 1], [], []>} : vector<16x16xf32>, vector<16x32xf32>, vector<16x32xf32> -> vector<16x32xf32>
    %c0_8 = arith.constant 0 : index
    %c0_9 = arith.constant 0 : index
    %8 = vector.load %arg5[%c0_8, %c0_9] : memref<1x32xf32, #tpu.memory_space<vmem>>, vector<1x32xf32>
    %9 = vector.broadcast %8 : vector<1x32xf32> to vector<16x32xf32>
    %10 = arith.addf %7, %9 : vector<16x32xf32>
    %11 = math.tanh %5 : vector<16x32xf32>
    %12 = arith.negf %10 : vector<16x32xf32>
    %13 = math.exp %12 : vector<16x32xf32>
    %cst_10 = arith.constant 1.000000e+00 : f32
    %14 = vector.broadcast %cst_10 : f32 to vector<16x32xf32>
    %15 = arith.addf %14, %13 : vector<16x32xf32>
    %16 = arith.divf %14, %15 : vector<16x32xf32>
    %17 = arith.mulf %11, %16 : vector<16x32xf32>
    %c0_11 = arith.constant 0 : index
    %c0_12 = arith.constant 0 : index
    %18 = vector.load %arg6[%c0_11, %c0_12] : memref<16x32xf32, #tpu.memory_space<vmem>>, vector<16x32xf32>
    tpu.vector_store %arg6[%c0_11, %c0_12], %17 {strides = array<i32>} : memref<16x32xf32, #tpu.memory_space<vmem>>, vector<16x32xf32>,
    return
  }
  func.func @transform_0(%arg0: i32) -> (i32, i32) {
    %c0_i32 = arith.constant 0 : i32
    %c0_i32_0 = arith.constant 0 : i32
    return %arg0, %c0_i32 : i32, i32
  }
  func.func @transform_1(%arg0: i32) -> (i32, i32) {
    %c0_i32 = arith.constant 0 : i32
    %c0_i32_0 = arith.constant 0 : i32
    %c0_i32_1 = arith.constant 0 : i32
    return %c0_i32, %c0_i32_0 : i32, i32
  }
  func.func @transform_2(%arg0: i32) -> (i32, i32) {
    %c0_i32 = arith.constant 0 : i32
    %c0_i32_0 = arith.constant 0 : i32
    %c0_i32_1 = arith.constant 0 : i32
    return %c0_i32, %c0_i32_0 : i32, i32
  }
  func.func @transform_3(%arg0: i32) -> (i32, i32) {
    %c0_i32 = arith.constant 0 : i32
    %c0_i32_0 = arith.constant 0 : i32
    %c0_i32_1 = arith.constant 0 : i32
    return %c0_i32, %c0_i32_0 : i32, i32
  }
  func.func @transform_4(%arg0: i32) -> (i32, i32) {
    %c0_i32 = arith.constant 0 : i32
    %c0_i32_0 = arith.constant 0 : i32
    %c0_i32_1 = arith.constant 0 : i32
    return %c0_i32, %c0_i32_0 : i32, i32
  }
  func.func @transform_5(%arg0: i32) -> (i32, i32) {
    %c0_i32 = arith.constant 0 : i32
    %c0_i32_0 = arith.constant 0 : i32
    return %arg0, %c0_i32 : i32, i32
  }
}

</mosaic_0001>

<llo_original>
// kernel: tpu_custom_call.1
$region0: #{tpu_custom_call.1}
  #allocation0 [shape = 'u32[]', space=smem, size = 0x4, offset = 0x4, fixed_abs, tag = 'smem constant byte address 0x4 - core index']
  #allocation1 [shape = 'u32[144,128]{1,0:T(1,128)}', space=vmem, size = 0x12000, scoped, tag = 'internal scratch']
  %s0 = inlined_call_operand.hbm [shape: f32[16,16], index: 0, kind: input, shape index: {}]
  %s1 = inlined_call_operand.hbm [shape: f32[16,32], index: 1, kind: input, shape index: {}]
  %s2 = inlined_call_operand.hbm [shape: f32[16,32], index: 2, kind: input, shape index: {}]
  %s3 = inlined_call_operand.vmem [shape: f32[1,32], index: 3, kind: input, shape index: {}]
  %s4 = inlined_call_operand.vmem [shape: f32[1,32], index: 4, kind: input, shape index: {}]
  %s5 = inlined_call_operand.hbm [shape: f32[16,32], index: 5, kind: output, shape index: {}]
  %s6 = sld [smem:[#allocation0]]
  $region42: #{tpu_custom_call.1} parent=0
    _
  %s8 = ssub.s32 1, %s6
  %s9 = scalar_select 0, %s8, %s6
  $region1: #{tpu_custom_call.1} parent=0
    #allocation2 [shape = 'u8[8192]{0}', space=vmem, size = 0x2000, scoped, tag = 'input window, operand 0, single buffered']
    #allocation3 [shape = 's32[1]{0}', space=sflag, size = 0x4, scoped, tag = 'scoped memory for tpu_custom_call.1']
    #allocation4 [shape = 's32[1]{0}', space=sflag, size = 0x4, scoped, tag = 'scoped memory for tpu_custom_call.1']
    #allocation5 [shape = 'u8[8192]{0}', space=vmem, size = 0x2000, scoped, tag = 'input window, operand 1, single buffered']
    #allocation6 [shape = 's32[1]{0}', space=sflag, size = 0x4, scoped, tag = 'scoped memory for tpu_custom_call.1']
    #allocation7 [shape = 'u8[8192]{0}', space=vmem, size = 0x2000, scoped, tag = 'input window, operand 2, single buffered']
    #allocation8 [shape = 'u8[8192]{0}', space=vmem, size = 0x2000, scoped, tag = 'output window, operand 0, single buffered']
    %10 = vsyncpa [#allocation3], 0
    %11 = vsyncpa [#allocation6], 0
    %12 = vsyncpa [#allocation4], 0
    // Predicated region
    $region2: #{tpu_custom_call.1} parent=1 // pred_check
      _
    $region3: #{tpu_custom_call.1} parent=1 // pred_check_branch
      %14 = sbr.rel (0) target = $region5
    $region4: #{tpu_custom_call.1} parent=1 // pred_region
      %s16 = ssub.s32 256, 256
      %17 = vsyncadd [#allocation3], %s16
      %s18 = sshll.u32 [#allocation2], 4
      %s19 = int_to_ptr.vmem [resolvable:$true] %s18
      %24 = dma.hbm_to_vmem [thread:$0]  %s0, 256, %s19, [#allocation3], 128, 128, 8
    $region5: #{tpu_custom_call.1} parent=1 // pred_fallthru
      _
    // Predicated region
    $region6: #{tpu_custom_call.1} parent=1 // pred_check
      _
    $region7: #{tpu_custom_call.1} parent=1 // pred_check_branch
      %26 = sbr.rel (0) target = $region9
    $region8: #{tpu_custom_call.1} parent=1 // pred_region
      %s28 = ssub.s32 256, 256
      %29 = vsyncadd [#allocation6], %s28
      %s30 = sshll.u32 [#allocation5], 4
      %s31 = int_to_ptr.vmem [resolvable:$true] %s30
      %36 = dma.hbm_to_vmem [thread:$0]  %s1, 256, %s31, [#allocation6], 128, 128, 8
    $region9: #{tpu_custom_call.1} parent=1 // pred_fallthru
      _
    // Predicated region
    $region10: #{tpu_custom_call.1} parent=1 // pred_check
      _
    $region11: #{tpu_custom_call.1} parent=1 // pred_check_branch
      %38 = sbr.rel (0) target = $region13
    $region12: #{tpu_custom_call.1} parent=1 // pred_region
      %s40 = ssub.s32 256, 256
      %41 = vsyncadd [#allocation6], %s40
      %s42 = sshll.u32 [#allocation7], 4
      %s43 = int_to_ptr.vmem [resolvable:$true] %s42
      %48 = dma.hbm_to_vmem [thread:$0]  %s2, 256, %s43, [#allocation6], 128, 128, 8
    $region13: #{tpu_custom_call.1} parent=1 // pred_fallthru
      _
    // Predicated region
    $region14: #{tpu_custom_call.1} parent=1 // pred_check
      _
    $region15: #{tpu_custom_call.1} parent=1 // pred_check_branch
      %50 = sbr.rel (0) target = $region17
    $region16: #{tpu_custom_call.1} parent=1 // pred_region
      _
    $region17: #{tpu_custom_call.1} parent=1 // pred_fallthru
      _
    // Predicated region
    $region18: #{tpu_custom_call.1} parent=1 // pred_check
      _
    $region19: #{tpu_custom_call.1} parent=1 // pred_check_branch
      %52 = sbr.rel (0) target = $region21
    $region20: #{tpu_custom_call.1} parent=1 // pred_region
      _
    $region21: #{tpu_custom_call.1} parent=1 // pred_fallthru
      _
    // Predicated region
    $region22: #{tpu_custom_call.1} parent=1 // pred_check
      _
    $region23: #{tpu_custom_call.1} parent=1 // pred_check_branch
      %54 = sbr.rel (0) target = $region25
    $region24: #{tpu_custom_call.1} parent=1 // pred_region
      %55 = dma.done [#allocation3], 256
    $region25: #{tpu_custom_call.1} parent=1 // pred_fallthru
      _
    // Predicated region
    $region26: #{tpu_custom_call.1} parent=1 // pred_check
      _
    $region27: #{tpu_custom_call.1} parent=1 // pred_check_branch
      %57 = sbr.rel (0) target = $region29
    $region28: #{tpu_custom_call.1} parent=1 // pred_region
      %58 = dma.done [#allocation6], 256
    $region29: #{tpu_custom_call.1} parent=1 // pred_fallthru
      _
    // Predicated region
    $region30: #{tpu_custom_call.1} parent=1 // pred_check
      _
    $region31: #{tpu_custom_call.1} parent=1 // pred_check_branch
      %60 = sbr.rel (0) target = $region33
    $region32: #{tpu_custom_call.1} parent=1 // pred_region
      %61 = dma.done [#allocation6], 256
    $region33: #{tpu_custom_call.1} parent=1 // pred_fallthru
      _
    %v62 = vld [vmem:[#allocation2] sm:$0xff]
    %v63 = vld [vmem:[#allocation2 + $0x8] sm:$0xff]
    %v64 = vld [vmem:[#allocation5] sm:$0xff]
    %v65 = vld [vmem:[#allocation5 + $0x8] sm:$0xff]
    %v66 = vld [vmem:[%s3] sm:$0x1]
    %v68 = vlaneseq
    %v69 = vshrl.u32 %v68, 7
    %v70 = vsub.s32 0, %v69
    %v71 = vrot.slane %v66, %v70
    %vm73 = vcmask 130048
    %v75 = vsel %vm73, %v62, 0
    %v78 = vsel %vm73, %v63, 0
    %80 = vmatprep.subr.mxu0 0.0
    %81 = vmatpush1.msra.mxu0 0.0
    %82 = vmatprep.subr.mxu0 0.0
    %83 = vmatpush1.msra.mxu0 0.0
    %84 = vmatprep.subr.mxu0 0.0
    %85 = vmatpush1.msra.mxu0 0.0
    %86 = vmatprep.subr.mxu0 0.0
    %87 = vmatpush1.msra.mxu0 0.0
    %88 = vmatprep.subr.mxu0 0.0
    %89 = vmatpush1.msra.mxu0 0.0
    %90 = vmatprep.subr.mxu0 0.0
    %91 = vmatpush1.msra.mxu0 0.0
    %92 = vmatprep.subr.mxu0 0.0
    %93 = vmatpush1.msra.mxu0 0.0
    %94 = vmatprep.subr.mxu0 0.0
    %95 = vmatpush1.msra.mxu0 0.0
    %96 = vmatprep.subr.mxu0 0.0
    %97 = vmatpush1.msra.mxu0 0.0
    %98 = vmatprep.subr.mxu0 0.0
    %99 = vmatpush1.msra.mxu0 0.0
    %100 = vmatprep.subr.mxu0 0.0
    %101 = vmatpush1.msra.mxu0 0.0
    %102 = vmatprep.subr.mxu0 0.0
    %103 = vmatpush1.msra.mxu0 0.0
    %104 = vmatprep.subr.mxu0 0.0
    %105 = vmatpush1.msra.mxu0 0.0
    %106 = vmatprep.subr.mxu0 0.0
    %107 = vmatpush1.msra.mxu0 0.0
    %108 = vmatprep.subr.mxu0 0.0
    %109 = vmatpush1.msra.mxu0 %v65
    %110 = vmatprep.subr.mxu0 0.0
    %111 = vmatpush1.msra.mxu0 %v64
    %112 = vmatprep.subr.mxu0 0.0
    %113 = vmatpush2.msra.mxu0 0.0
    %114 = vmatprep.subr.mxu0 0.0
    %115 = vmatpush2.msra.mxu0 0.0
    %116 = vmatprep.subr.mxu0 0.0
    %117 = vmatpush2.msra.mxu0 0.0
    %118 = vmatprep.subr.mxu0 0.0
    %119 = vmatpush2.msra.mxu0 0.0
    %120 = vmatprep.subr.mxu0 0.0
    %121 = vmatpush2.msra.mxu0 0.0
    %122 = vmatprep.subr.mxu0 0.0
    %123 = vmatpush2.msra.mxu0 0.0
    %124 = vmatprep.subr.mxu0 0.0
    %125 = vmatpush2.msra.mxu0 0.0
    %126 = vmatprep.subr.mxu0 0.0
    %127 = vmatpush2.msra.mxu0 0.0
    %128 = vmatprep.subr.mxu0 0.0
    %129 = vmatpush2.msra.mxu0 0.0
    %130 = vmatprep.subr.mxu0 0.0
    %131 = vmatpush2.msra.mxu0 0.0
    %132 = vmatprep.subr.mxu0 0.0
    %133 = vmatpush2.msra.mxu0 0.0
    %134 = vmatprep.subr.mxu0 0.0
    %135 = vmatpush2.msra.mxu0 0.0
    %136 = vmatprep.subr.mxu0 0.0
    %137 = vmatpush2.msra.mxu0 0.0
    %138 = vmatprep.subr.mxu0 0.0
    %139 = vmatpush2.msra.mxu0 0.0
    %140 = vmatprep.subr.mxu0 0.0
    %141 = vmatpush2.msra.mxu0 0.0
    %142 = vmatprep.subr.mxu0 0.0
    %143 = vmatpush2.msra.mxu0 0.0
    %144 = vmatprep.mubr.f32.mxu0 0.0
    %145 = vmatmul.mubr.f32.gmra.mxu0 %v75
    %v146 = vpop.f32.mrf.mxu0
    %v147 = vadd.f32 %v71, %v146
    %v148 = vpop.f32.mrf.mxu0
    %149 = vmatprep.mubr.f32.mxu0 0.0
    %150 = vmatmul.mubr.f32.gmra.mxu0 %v78
    %v151 = vpop.f32.mrf.mxu0
    %v152 = vadd.f32 %v71, %v151
    %v153 = vpop.f32.mrf.mxu0
    %154 = vdwg.mxu0
    %v155 = vld [vmem:[#allocation7] sm:$0xff]
    %v156 = vld [vmem:[#allocation7 + $0x8] sm:$0xff]
    %v157 = vld [vmem:[%s4] sm:$0x1]
    %v159 = vlaneseq
    %v160 = vshrl.u32 %v159, 7
    %v161 = vsub.s32 0, %v160
    %v162 = vrot.slane %v157, %v161
    %164 = vmatprep.subr.mxu0 0.0
    %165 = vmatpush1.msra.mxu0 0.0
    %166 = vmatprep.subr.mxu0 0.0
    %167 = vmatpush1.msra.mxu0 0.0
    %168 = vmatprep.subr.mxu0 0.0
    %169 = vmatpush1.msra.mxu0 0.0
    %170 = vmatprep.subr.mxu0 0.0
    %171 = vmatpush1.msra.mxu0 0.0
    %172 = vmatprep.subr.mxu0 0.0
    %173 = vmatpush1.msra.mxu0 0.0
    %174 = vmatprep.subr.mxu0 0.0
    %175 = vmatpush1.msra.mxu0 0.0
    %176 = vmatprep.subr.mxu0 0.0
    %177 = vmatpush1.msra.mxu0 0.0
    %178 = vmatprep.subr.mxu0 0.0
    %179 = vmatpush1.msra.mxu0 0.0
    %180 = vmatprep.subr.mxu0 0.0
    %181 = vmatpush1.msra.mxu0 0.0
    %182 = vmatprep.subr.mxu0 0.0
    %183 = vmatpush1.msra.mxu0 0.0
    %184 = vmatprep.subr.mxu0 0.0
    %185 = vmatpush1.msra.mxu0 0.0
    %186 = vmatprep.subr.mxu0 0.0
    %187 = vmatpush1.msra.mxu0 0.0
    %188 = vmatprep.subr.mxu0 0.0
    %189 = vmatpush1.msra.mxu0 0.0
    %190 = vmatprep.subr.mxu0 0.0
    %191 = vmatpush1.msra.mxu0 0.0
    %192 = vmatprep.subr.mxu0 0.0
    %193 = vmatpush1.msra.mxu0 %v156
    %194 = vmatprep.subr.mxu0 0.0
    %195 = vmatpush1.msra.mxu0 %v155
    %196 = vmatprep.subr.mxu0 0.0
    %197 = vmatpush2.msra.mxu0 0.0
    %198 = vmatprep.subr.mxu0 0.0
    %199 = vmatpush2.msra.mxu0 0.0
    %200 = vmatprep.subr.mxu0 0.0
    %201 = vmatpush2.msra.mxu0 0.0
    %202 = vmatprep.subr.mxu0 0.0
    %203 = vmatpush2.msra.mxu0 0.0
    %204 = vmatprep.subr.mxu0 0.0
    %205 = vmatpush2.msra.mxu0 0.0
    %206 = vmatprep.subr.mxu0 0.0
    %207 = vmatpush2.msra.mxu0 0.0
    %208 = vmatprep.subr.mxu0 0.0
    %209 = vmatpush2.msra.mxu0 0.0
    %210 = vmatprep.subr.mxu0 0.0
    %211 = vmatpush2.msra.mxu0 0.0
    %212 = vmatprep.subr.mxu0 0.0
    %213 = vmatpush2.msra.mxu0 0.0
    %214 = vmatprep.subr.mxu0 0.0
    %215 = vmatpush2.msra.mxu0 0.0
    %216 = vmatprep.subr.mxu0 0.0
    %217 = vmatpush2.msra.mxu0 0.0
    %218 = vmatprep.subr.mxu0 0.0
    %219 = vmatpush2.msra.mxu0 0.0
    %220 = vmatprep.subr.mxu0 0.0
    %221 = vmatpush2.msra.mxu0 0.0
    %222 = vmatprep.subr.mxu0 0.0
    %223 = vmatpush2.msra.mxu0 0.0
    %224 = vmatprep.subr.mxu0 0.0
    %225 = vmatpush2.msra.mxu0 0.0
    %226 = vmatprep.subr.mxu0 0.0
    %227 = vmatpush2.msra.mxu0 0.0
    %228 = vmatprep.mubr.f32.mxu0 0.0
    %229 = vmatmul.mubr.f32.gmra.mxu0 %v75
    %v230 = vpop.f32.mrf.mxu0
    %v231 = vadd.f32 %v162, %v230
    %v232 = vpop.f32.mrf.mxu0
    %233 = vmatprep.mubr.f32.mxu0 0.0
    %234 = vmatmul.mubr.f32.gmra.mxu0 %v78
    %v235 = vpop.f32.mrf.mxu0
    %v236 = vadd.f32 %v162, %v235
    %v237 = vpop.f32.mrf.mxu0
    %238 = vdwg.mxu0
    %v239 = vtanh.pop %v147
    %v240 = vtanh.pop %v152
    %v241 = vxor.u32 %v231, 2147483648
    %v242 = vxor.u32 %v236, 2147483648
    %v243 = vmul.f32 %v241, 1.442695
    %v244 = vpow.pop %v243
    %v245 = vmul.f32 %v242, 1.442695
    %v246 = vpow.pop %v245
    %v247 = vadd.f32 %v244, 1.0
    %v248 = vadd.f32 %v246, 1.0
    %v249 = vrcp.pop %v247
    %v250 = vmul.f32 1.0, %v249
    %v251 = vrcp.pop %v248
    %v252 = vmul.f32 1.0, %v251
    %v253 = vmul.f32 %v239, %v250
    %v254 = vmul.f32 %v240, %v252
    %vm255 = vcmask 261120
    %256 = vst.msk [vmem:[#allocation8] sm:$0xff] %vm255, %v253
    %257 = vst.msk [vmem:[#allocation8 + $0x8] sm:$0xff] %vm255, %v254
    // Predicated region
    $region34: #{tpu_custom_call.1} parent=1 // pred_check
      _
    $region35: #{tpu_custom_call.1} parent=1 // pred_check_branch
      %259 = sbr.rel (0) target = $region37
    $region36: #{tpu_custom_call.1} parent=1 // pred_region
      %s261 = ssub.s32 256, 256
      %262 = vsyncadd [#allocation4], %s261
      %s263 = sshll.u32 [#allocation8], 4
      %s264 = int_to_ptr.vmem [resolvable:$true] %s263
      %269 = dma.vmem_to_hbm [thread:$0]  %s264, 256, %s5, [#allocation4], 128, 128, 8
    $region37: #{tpu_custom_call.1} parent=1 // pred_fallthru
      _
    // Predicated region
    $region38: #{tpu_custom_call.1} parent=1 // pred_check
      _
    $region39: #{tpu_custom_call.1} parent=1 // pred_check_branch
      %271 = sbr.rel (0) target = $region41
    $region40: #{tpu_custom_call.1} parent=1 // pred_region
      %272 = dma.done [#allocation4], 256
    $region41: #{tpu_custom_call.1} parent=1 // pred_fallthru
      _
    %273 = vsyncpa [#allocation3], 1
    %274 = vsyncpa [#allocation6], 1
    %275 = vsyncpa [#allocation4], 1

</llo_original>
